<compile_context>
chip_gen: v7x
topology: tpu7x:2x2x1
jax: 0.10.0
libtpu: 0.0.40
codegen_flags: <defaults>
</compile_context>

<pallas_src>
import functools
import math

import jax
import jax.numpy as jnp
from jax.experimental import pallas as pl
from jax.experimental.pallas import tpu as pltpu


# ----------------------------------------------------------------------------
# Kernel 1: L2-normalize rows, fold 1/sqrt(temperature), cast to bf16.
# ----------------------------------------------------------------------------
def _normalize_scale_kernel(x_ref, o_ref, *, scale):
    x = x_ref[...].astype(jnp.float32)
    ssq = jnp.sum(x * x, axis=-1, keepdims=True)
    # F.normalize: x / max(||x||, 1e-12)  ==  x * rsqrt(max(||x||^2, 1e-24))
    inv = jax.lax.rsqrt(jnp.maximum(ssq, jnp.float32(1e-24)))
    o_ref[...] = (x * (inv * jnp.float32(scale))).astype(o_ref.dtype)


# ----------------------------------------------------------------------------
# Kernel 2: fused flash-style cross-entropy for both directions.
#   inputs are pre-normalized, pre-scaled (by 1/sqrt(T)) bf16 embeddings.
# ----------------------------------------------------------------------------
def _flash_ce_kernel(x1i_ref, x2i_ref, x1j_ref, x2j_ref, out_ref,
                     m12_ref, l12_ref, m21_ref, l21_ref,
                     *, n_valid, col_block):
    j = pl.program_id(1)
    nj = pl.num_programs(1)

    @pl.when(j == 0)
    def _init():
        m12_ref[...] = jnp.full(m12_ref.shape, -1e30, jnp.float32)
        l12_ref[...] = jnp.zeros(l12_ref.shape, jnp.float32)
        m21_ref[...] = jnp.full(m21_ref.shape, -1e30, jnp.float32)
        l21_ref[...] = jnp.zeros(l21_ref.shape, jnp.float32)

    x1i = x1i_ref[...]          # (TM, C) bf16, = x1n[i-tile] / sqrt(T)
    x2i = x2i_ref[...]          # (TM, C) bf16, = x2n[i-tile] / sqrt(T)
    x1j = x1j_ref[...]          # (TN, C) bf16
    x2j = x2j_ref[...]          # (TN, C) bf16

    dims = (((1,), (1,)), ((), ()))
    # s12[a,b] = <x1n_a, x2n_b> / T   ;   s21[a,b] = <x2n_a, x1n_b> / T
    s12 = jax.lax.dot_general(x1i, x2j, dims, preferred_element_type=jnp.float32)
    s21 = jax.lax.dot_general(x2i, x1j, dims, preferred_element_type=jnp.float32)

    # Mask padded (out-of-range) columns.
    col_ids = jax.lax.broadcasted_iota(jnp.int32, s12.shape, 1) + j * col_block
    valid = col_ids < n_valid
    neg = jnp.float32(-1e30)
    s12 = jnp.where(valid, s12, neg)
    s21 = jnp.where(valid, s21, neg)

    def _online_lse(m_ref, l_ref, s):
        m_prev = m_ref[...]                                        # (TM, 1)
        m_new = jnp.maximum(m_prev, jnp.max(s, axis=-1, keepdims=True))
        l_ref[...] = (jnp.exp(m_prev - m_new) * l_ref[...]
                      + jnp.sum(jnp.exp(s - m_new), axis=-1, keepdims=True))
        m_ref[...] = m_new

    _online_lse(m12_ref, l12_ref, s12)
    _online_lse(m21_ref, l21_ref, s21)

    @pl.when(j == nj - 1)
    def _finalize():
        # diag_a = S[a, a] = <x1n_a, x2n_a> / T  (scale already folded into inputs)
        diag = jnp.sum(x1i.astype(jnp.float32) * x2i.astype(jnp.float32),
                       axis=-1, keepdims=True)                     # (TM, 1)
        lse12 = m12_ref[...] + jnp.log(l12_ref[...])
        lse21 = m21_ref[...] + jnp.log(l21_ref[...])
        out_ref[...] = (lse12 - diag) + (lse21 - diag)             # per-row loss sum


# ----------------------------------------------------------------------------
# Wrapper
# ----------------------------------------------------------------------------
def simclr_loss_ptv_new(x1, x2, temperature=0.5, loss_weight=1.0):
    """SimCLRLoss_PTV_New forward: returns a scalar loss."""
    assert x1.shape == x2.shape and x1.ndim == 2
    assert temperature > 0.0
    n, c = x1.shape

    # Tile sizes: MXU-friendly; 256 on large batches (v6e/v7x MXU), 128 otherwise.
    blk = 256 if n >= 1024 else 128
    pad_n = ((n + blk - 1) // blk) * blk
    pad_c = ((c + 127) // 128) * 128

    x1p = jnp.pad(x1.astype(jnp.float32), ((0, pad_n - n), (0, pad_c - c)))
    x2p = jnp.pad(x2.astype(jnp.float32), ((0, pad_n - n), (0, pad_c - c)))

    scale = 1.0 / math.sqrt(float(temperature))   # folded into both operands

    norm_kernel = functools.partial(_normalize_scale_kernel, scale=scale)

    def _normalize(xp):
        return pl.pallas_call(
            norm_kernel,
            out_shape=jax.ShapeDtypeStruct((pad_n, pad_c), jnp.bfloat16),
            grid=(pad_n // blk,),
            in_specs=[pl.BlockSpec((blk, pad_c), lambda i: (i, 0))],
            out_specs=pl.BlockSpec((blk, pad_c), lambda i: (i, 0)),
            compiler_params=pltpu.CompilerParams(
                dimension_semantics=("parallel",)),
        )(xp)

    x1n = _normalize(x1p)   # (pad_n, pad_c) bf16, rows L2-normalized * 1/sqrt(T)
    x2n = _normalize(x2p)

    ce_kernel = functools.partial(_flash_ce_kernel, n_valid=n, col_block=blk)

    row_loss = pl.pallas_call(
        ce_kernel,
        out_shape=jax.ShapeDtypeStruct((pad_n, 1), jnp.float32),
        grid=(pad_n // blk, pad_n // blk),
        in_specs=[
            pl.BlockSpec((blk, pad_c), lambda i, j: (i, 0)),   # x1n row tile (i)
            pl.BlockSpec((blk, pad_c), lambda i, j: (i, 0)),   # x2n row tile (i)
            pl.BlockSpec((blk, pad_c), lambda i, j: (j, 0)),   # x1n col tile (j)
            pl.BlockSpec((blk, pad_c), lambda i, j: (j, 0)),   # x2n col tile (j)
        ],
        out_specs=pl.BlockSpec((blk, 1), lambda i, j: (i, 0)),
        scratch_shapes=[pltpu.VMEM((blk, 1), jnp.float32)] * 4,  # m12, l12, m21, l21
        compiler_params=pltpu.CompilerParams(
            dimension_semantics=("parallel", "arbitrary"),
            vmem_limit_bytes=32 * 1024 * 1024),
    )(x1n, x2n, x1n, x2n)

    # mean over the N valid rows of [(lse12 - diag) + (lse21 - diag)]
    loss = jnp.float32(loss_weight) * jnp.mean(row_loss[:n, 0])
    return loss


# ----------------------------------------------------------------------------
# References for correctness checking
# ----------------------------------------------------------------------------
def _reference_loss_f32(x1, x2, temperature=0.5, loss_weight=1.0):
    """Plain-JAX float32 reference of the PyTorch forward."""
    def normalize(x):
        nrm = jnp.sqrt(jnp.sum(x * x, axis=1, keepdims=True))
        return x / jnp.maximum(nrm, 1e-12)

    def ce_diag(a, b):
        s = (normalize(a) @ normalize(b).T) / temperature
        n = s.shape[0]
        logp = jax.nn.log_softmax(s, axis=1)
        return -jnp.mean(logp[jnp.arange(n), jnp.arange(n)])

    return loss_weight * (ce_diag(x1, x2) + ce_diag(x2, x1))


def _reference_loss_bf16(x1, x2, temperature=0.5, loss_weight=1.0):
    """Reference mirroring the kernel's bf16 matmul inputs."""
    scale = 1.0 / math.sqrt(float(temperature))

    def normalize_scale(x):
        x = x.astype(jnp.float32)
        ssq = jnp.sum(x * x, axis=1, keepdims=True)
        inv = jax.lax.rsqrt(jnp.maximum(ssq, 1e-24))
        return (x * (inv * scale)).astype(jnp.bfloat16)

    a = normalize_scale(x1)
    b = normalize_scale(x2)
    s12 = jnp.dot(a, b.T, preferred_element_type=jnp.float32)
    s21 = jnp.dot(b, a.T, preferred_element_type=jnp.float32)
    diag = jnp.sum(a.astype(jnp.float32) * b.astype(jnp.float32), axis=1)
    lse12 = jax.nn.logsumexp(s12, axis=1)
    lse21 = jax.nn.logsumexp(s21, axis=1)
    return loss_weight * (jnp.mean(lse12 - diag) + jnp.mean(lse21 - diag))


if __name__ == "__main__":
    key = jax.random.PRNGKey(0)
    temperature = 0.5
    loss_weight = 1.0

    # (N, C) embedding pairs; second case exercises multi-tile grid + column masking.
    for (N, C) in [(8, 32), (200, 96)]:
        k1, k2, key = jax.random.split(key, 3)
        x1 = jax.random.normal(k1, (N, C), dtype=jnp.float32)
        x2 = jax.random.normal(k2, (N, C), dtype=jnp.float32)

        loss = simclr_loss_ptv_new(x1, x2, temperature=temperature,
                                   loss_weight=loss_weight)
        loss = jax.block_until_ready(loss)

        ref16 = jax.block_until_ready(
            _reference_loss_bf16(x1, x2, temperature, loss_weight))
        ref32 = jax.block_until_ready(
            _reference_loss_f32(x1, x2, temperature, loss_weight))

        assert jnp.allclose(loss, ref16, atol=5e-3, rtol=5e-3), (N, C, loss, ref16)
        assert jnp.allclose(loss, ref32, atol=3e-2, rtol=3e-2), (N, C, loss, ref32)

    print("KERNEL_OK")
</pallas_src>

<mosaic_0001>
module attributes {stable_mosaic.version = 11 : i64} {
  func.func @_normalize_scale_kernel(%arg0: i32, %arg1: memref<128x128xf32, #tpu.memory_space<vmem>>, %arg2: memref<128x128xbf16, #tpu.memory_space<vmem>>) attributes {dimension_semantics = [#tpu.dimension_semantics<parallel>], iteration_bounds = array<i64: 1>, scalar_prefetch = 0 : i64, scratch_operands = 0 : i64, tpu.core_type = #tpu.core_type<tc>, window_params = [{transform_indices = @transform_0, window_bounds = array<i64: 128, 128>}, {transform_indices = @transform_1, window_bounds = array<i64: 128, 128>}]} {
    %c0 = arith.constant 0 : index
    %c0_0 = arith.constant 0 : index
    %0 = vector.load %arg1[%c0, %c0_0] : memref<128x128xf32, #tpu.memory_space<vmem>>, vector<128x128xf32>
    %1 = arith.mulf %0, %0 : vector<128x128xf32>
    %cst = arith.constant dense<0.000000e+00> : vector<128xf32>
    %2 = vector.multi_reduction <add>, %1, %cst [1] : vector<128x128xf32> to vector<128xf32>
    %3 = vector.shape_cast %2 : vector<128xf32> to vector<128x1xf32>
    %cst_1 = arith.constant 1.000000e-24 : f32
    %4 = vector.broadcast %cst_1 : f32 to vector<128x1xf32>
    %5 = arith.maximumf %3, %4 : vector<128x1xf32>
    %6 = math.rsqrt %5 : vector<128x1xf32>
    %cst_2 = arith.constant 1.41421354 : f32
    %7 = vector.broadcast %cst_2 : f32 to vector<128x1xf32>
    %8 = arith.mulf %6, %7 : vector<128x1xf32>
    %9 = vector.broadcast %8 : vector<128x1xf32> to vector<128x128xf32>
    %10 = arith.mulf %0, %9 : vector<128x128xf32>
    %11 = arith.truncf %10 : vector<128x128xf32> to vector<128x128xbf16>
    %c0_3 = arith.constant 0 : index
    %c0_4 = arith.constant 0 : index
    %12 = vector.load %arg2[%c0_3, %c0_4] : memref<128x128xbf16, #tpu.memory_space<vmem>>, vector<128x128xbf16>
    tpu.vector_store %arg2[%c0_3, %c0_4], %11 {strides = array<i32>} : memref<128x128xbf16, #tpu.memory_space<vmem>>, vector<128x128xbf16>,
    return
  }
  func.func @transform_0(%arg0: i32) -> (i32, i32) {
    %c0_i32 = arith.constant 0 : i32
    %c0_i32_0 = arith.constant 0 : i32
    return %arg0, %c0_i32 : i32, i32
  }
  func.func @transform_1(%arg0: i32) -> (i32, i32) {
    %c0_i32 = arith.constant 0 : i32
    %c0_i32_0 = arith.constant 0 : i32
    return %arg0, %c0_i32 : i32, i32
  }
}

</mosaic_0001>

<llo_original>
// kernel: tpu_custom_call.1
$region0: #{tpu_custom_call.1}
  #allocation0 [shape = 'u32[]', space=smem, size = 0x4, offset = 0x4, fixed_abs, tag = 'smem constant byte address 0x4 - core index']
  #allocation1 [shape = 'u32[144,128]{1,0:T(1,128)}', space=vmem, size = 0x12000, scoped, tag = 'internal scratch']
  %s0 = inlined_call_operand.hbm [shape: f32[128,128], index: 0, kind: input, shape index: {}]
  %s1 = inlined_call_operand.hbm [shape: bf16[128,128], index: 1, kind: output, shape index: {}]
  %s2 = sld [smem:[#allocation0]]
  $region18: #{tpu_custom_call.1} parent=0
    _
  %s4 = ssub.s32 1, %s2
  %s5 = scalar_select 0, %s4, %s2
  $region1: #{tpu_custom_call.1} parent=0
    #allocation2 [shape = 'u8[65536]{0}', space=vmem, size = 0x10000, scoped, tag = 'input window, operand 0, single buffered']
    #allocation3 [shape = 's32[1]{0}', space=sflag, size = 0x4, scoped, tag = 'scoped memory for tpu_custom_call.1']
    #allocation4 [shape = 's32[1]{0}', space=sflag, size = 0x4, scoped, tag = 'scoped memory for tpu_custom_call.1']
    #allocation5 [shape = 'u8[32768]{0}', space=vmem, size = 0x8000, scoped, tag = 'output window, operand 0, single buffered']
    %6 = vsyncpa [#allocation3], 0
    %7 = vsyncpa [#allocation4], 0
    // Predicated region
    $region2: #{tpu_custom_call.1} parent=1 // pred_check
      _
    $region3: #{tpu_custom_call.1} parent=1 // pred_check_branch
      %9 = sbr.rel (0) target = $region5
    $region4: #{tpu_custom_call.1} parent=1 // pred_region
      %s11 = ssub.s32 2048, 2048
      %12 = vsyncadd [#allocation3], %s11
      %s13 = sshll.u32 [#allocation2], 4
      %s14 = int_to_ptr.vmem [resolvable:$true] %s13
      %19 = dma.hbm_to_vmem [thread:$0]  %s0, 2048, %s14, [#allocation3], 128, 128, 8
    $region5: #{tpu_custom_call.1} parent=1 // pred_fallthru
      _
    // Predicated region
    $region6: #{tpu_custom_call.1} parent=1 // pred_check
      _
    $region7: #{tpu_custom_call.1} parent=1 // pred_check_branch
      %21 = sbr.rel (0) target = $region9
    $region8: #{tpu_custom_call.1} parent=1 // pred_region
      %22 = dma.done [#allocation3], 2048
    $region9: #{tpu_custom_call.1} parent=1 // pred_fallthru
      _
    %v23 = vld [vmem:[#allocation2] sm:$0xff]
    %v24 = vld [vmem:[#allocation2 + $0x8] sm:$0xff]
    %v25 = vld [vmem:[#allocation2 + $0x10] sm:$0xff]
    %v26 = vld [vmem:[#allocation2 + $0x18] sm:$0xff]
    %v27 = vld [vmem:[#allocation2 + $0x20] sm:$0xff]
    %v28 = vld [vmem:[#allocation2 + $0x28] sm:$0xff]
    %v29 = vld [vmem:[#allocation2 + $0x30] sm:$0xff]
    %v30 = vld [vmem:[#allocation2 + $0x38] sm:$0xff]
    %v31 = vld [vmem:[#allocation2 + $0x40] sm:$0xff]
    %v32 = vld [vmem:[#allocation2 + $0x48] sm:$0xff]
    %v33 = vld [vmem:[#allocation2 + $0x50] sm:$0xff]
    %v34 = vld [vmem:[#allocation2 + $0x58] sm:$0xff]
    %v35 = vld [vmem:[#allocation2 + $0x60] sm:$0xff]
    %v36 = vld [vmem:[#allocation2 + $0x68] sm:$0xff]
    %v37 = vld [vmem:[#allocation2 + $0x70] sm:$0xff]
    %v38 = vld [vmem:[#allocation2 + $0x78] sm:$0xff]
    %v39 = vmul.f32 %v23, %v23
    %v40 = vmul.f32 %v24, %v24
    %v41 = vmul.f32 %v25, %v25
    %v42 = vmul.f32 %v26, %v26
    %v43 = vmul.f32 %v27, %v27
    %v44 = vmul.f32 %v28, %v28
    %v45 = vmul.f32 %v29, %v29
    %v46 = vmul.f32 %v30, %v30
    %v47 = vmul.f32 %v31, %v31
    %v48 = vmul.f32 %v32, %v32
    %v49 = vmul.f32 %v33, %v33
    %v50 = vmul.f32 %v34, %v34
    %v51 = vmul.f32 %v35, %v35
    %v52 = vmul.f32 %v36, %v36
    %v53 = vmul.f32 %v37, %v37
    %v54 = vmul.f32 %v38, %v38
    %55 = vadd.xlane.f32.xlu0 %v39
    %v56 = vpop.xlane.xlu0 %55
    %57 = vadd.xlane.f32.xlu0 %v40
    %v58 = vpop.xlane.xlu0 %57
    %59 = vadd.xlane.f32.xlu0 %v41
    %v60 = vpop.xlane.xlu0 %59
    %61 = vadd.xlane.f32.xlu0 %v42
    %v62 = vpop.xlane.xlu0 %61
    %63 = vadd.xlane.f32.xlu0 %v43
    %v64 = vpop.xlane.xlu0 %63
    %65 = vadd.xlane.f32.xlu0 %v44
    %v66 = vpop.xlane.xlu0 %65
    %67 = vadd.xlane.f32.xlu0 %v45
    %v68 = vpop.xlane.xlu0 %67
    %69 = vadd.xlane.f32.xlu0 %v46
    %v70 = vpop.xlane.xlu0 %69
    %71 = vadd.xlane.f32.xlu0 %v47
    %v72 = vpop.xlane.xlu0 %71
    %73 = vadd.xlane.f32.xlu0 %v48
    %v74 = vpop.xlane.xlu0 %73
    %75 = vadd.xlane.f32.xlu0 %v49
    %v76 = vpop.xlane.xlu0 %75
    %77 = vadd.xlane.f32.xlu0 %v50
    %v78 = vpop.xlane.xlu0 %77
    %79 = vadd.xlane.f32.xlu0 %v51
    %v80 = vpop.xlane.xlu0 %79
    %81 = vadd.xlane.f32.xlu0 %v52
    %v82 = vpop.xlane.xlu0 %81
    %83 = vadd.xlane.f32.xlu0 %v53
    %v84 = vpop.xlane.xlu0 %83
    %85 = vadd.xlane.f32.xlu0 %v54
    %v86 = vpop.xlane.xlu0 %85
    %v87 = vmax.f32 %v56, 1e-24
    %v88 = vmax.f32 %v58, 1e-24
    %v89 = vmax.f32 %v60, 1e-24
    %v90 = vmax.f32 %v62, 1e-24
    %v91 = vmax.f32 %v64, 1e-24
    %v92 = vmax.f32 %v66, 1e-24
    %v93 = vmax.f32 %v68, 1e-24
    %v94 = vmax.f32 %v70, 1e-24
    %v95 = vmax.f32 %v72, 1e-24
    %v96 = vmax.f32 %v74, 1e-24
    %v97 = vmax.f32 %v76, 1e-24
    %v98 = vmax.f32 %v78, 1e-24
    %v99 = vmax.f32 %v80, 1e-24
    %v100 = vmax.f32 %v82, 1e-24
    %v101 = vmax.f32 %v84, 1e-24
    %v102 = vmax.f32 %v86, 1e-24
    %v103 = vrsqrt.pop %v87
    %v104 = vrsqrt.pop %v88
    %v105 = vrsqrt.pop %v89
    %v106 = vrsqrt.pop %v90
    %v107 = vrsqrt.pop %v91
    %v108 = vrsqrt.pop %v92
    %v109 = vrsqrt.pop %v93
    %v110 = vrsqrt.pop %v94
    %v111 = vrsqrt.pop %v95
    %v112 = vrsqrt.pop %v96
    %v113 = vrsqrt.pop %v97
    %v114 = vrsqrt.pop %v98
    %v115 = vrsqrt.pop %v99
    %v116 = vrsqrt.pop %v100
    %v117 = vrsqrt.pop %v101
    %v118 = vrsqrt.pop %v102
    %v119 = vmul.f32 %v103, 1.4142135
    %v120 = vmul.f32 %v104, 1.4142135
    %v121 = vmul.f32 %v105, 1.4142135
    %v122 = vmul.f32 %v106, 1.4142135
    %v123 = vmul.f32 %v107, 1.4142135
    %v124 = vmul.f32 %v108, 1.4142135
    %v125 = vmul.f32 %v109, 1.4142135
    %v126 = vmul.f32 %v110, 1.4142135
    %v127 = vmul.f32 %v111, 1.4142135
    %v128 = vmul.f32 %v112, 1.4142135
    %v129 = vmul.f32 %v113, 1.4142135
    %v130 = vmul.f32 %v114, 1.4142135
    %v131 = vmul.f32 %v115, 1.4142135
    %v132 = vmul.f32 %v116, 1.4142135
    %v133 = vmul.f32 %v117, 1.4142135
    %v134 = vmul.f32 %v118, 1.4142135
    %v135 = vmul.f32 %v23, %v119
    %v136 = vmul.f32 %v24, %v120
    %v137 = vmul.f32 %v25, %v121
    %v138 = vmul.f32 %v26, %v122
    %v139 = vmul.f32 %v27, %v123
    %v140 = vmul.f32 %v28, %v124
    %v141 = vmul.f32 %v29, %v125
    %v142 = vmul.f32 %v30, %v126
    %v143 = vmul.f32 %v31, %v127
    %v144 = vmul.f32 %v32, %v128
    %v145 = vmul.f32 %v33, %v129
    %v146 = vmul.f32 %v34, %v130
    %v147 = vmul.f32 %v35, %v131
    %v148 = vmul.f32 %v36, %v132
    %v149 = vmul.f32 %v37, %v133
    %v150 = vmul.f32 %v38, %v134
    %v151 = vpack.c.bf16 %v136, %v135
    %v152 = vpack.c.bf16 %v138, %v137
    %v153 = vpack.c.bf16 %v140, %v139
    %v154 = vpack.c.bf16 %v142, %v141
    %v155 = vpack.c.bf16 %v144, %v143
    %v156 = vpack.c.bf16 %v146, %v145
    %v157 = vpack.c.bf16 %v148, %v147
    %v158 = vpack.c.bf16 %v150, %v149
    %v167 = vunpack.c.l.b16 %v151
    %v168 = vunpack.c.h.b16 %v151
    %v169 = vunpack.c.l.b16 %v152
    %v170 = vunpack.c.h.b16 %v152
    %v171 = vunpack.c.l.b16 %v153
    %v172 = vunpack.c.h.b16 %v153
    %v173 = vunpack.c.l.b16 %v154
    %v174 = vunpack.c.h.b16 %v154
    %v175 = vunpack.c.l.b16 %v155
    %v176 = vunpack.c.h.b16 %v155
    %v177 = vunpack.c.l.b16 %v156
    %v178 = vunpack.c.h.b16 %v156
    %v179 = vunpack.c.l.b16 %v157
    %v180 = vunpack.c.h.b16 %v157
    %v181 = vunpack.c.l.b16 %v158
    %v182 = vunpack.c.h.b16 %v158
    %v183 = vpack.c.b16 %v167, %v167
    %v184 = vpack.c.b16 %v168, %v168
    %v185 = vpack.c.b16 %v169, %v169
    %v186 = vpack.c.b16 %v170, %v170
    %v187 = vpack.c.b16 %v171, %v171
    %v188 = vpack.c.b16 %v172, %v172
    %v189 = vpack.c.b16 %v173, %v173
    %v190 = vpack.c.b16 %v174, %v174
    %v191 = vpack.c.b16 %v175, %v175
    %v192 = vpack.c.b16 %v176, %v176
    %v193 = vpack.c.b16 %v177, %v177
    %v194 = vpack.c.b16 %v178, %v178
    %v195 = vpack.c.b16 %v179, %v179
    %v196 = vpack.c.b16 %v180, %v180
    %v197 = vpack.c.b16 %v181, %v181
    %v198 = vpack.c.b16 %v182, %v182
    %215 = vst [vmem:[#allocation5] sm:$0xf] %v183
    %216 = vst [vmem:[#allocation5 + $0x4] sm:$0xf] %v184
    %217 = vst [vmem:[#allocation5 + $0x8] sm:$0xf] %v185
    %218 = vst [vmem:[#allocation5 + $0xc] sm:$0xf] %v186
    %219 = vst [vmem:[#allocation5 + $0x10] sm:$0xf] %v187
    %220 = vst [vmem:[#allocation5 + $0x14] sm:$0xf] %v188
    %221 = vst [vmem:[#allocation5 + $0x18] sm:$0xf] %v189
    %222 = vst [vmem:[#allocation5 + $0x1c] sm:$0xf] %v190
    %223 = vst [vmem:[#allocation5 + $0x20] sm:$0xf] %v191
    %224 = vst [vmem:[#allocation5 + $0x24] sm:$0xf] %v192
    %225 = vst [vmem:[#allocation5 + $0x28] sm:$0xf] %v193
    %226 = vst [vmem:[#allocation5 + $0x2c] sm:$0xf] %v194
    %227 = vst [vmem:[#allocation5 + $0x30] sm:$0xf] %v195
    %228 = vst [vmem:[#allocation5 + $0x34] sm:$0xf] %v196
    %229 = vst [vmem:[#allocation5 + $0x38] sm:$0xf] %v197
    %230 = vst [vmem:[#allocation5 + $0x3c] sm:$0xf] %v198
    // Predicated region
    $region10: #{tpu_custom_call.1} parent=1 // pred_check
      _
    $region11: #{tpu_custom_call.1} parent=1 // pred_check_branch
      %232 = sbr.rel (0) target = $region13
    $region12: #{tpu_custom_call.1} parent=1 // pred_region
      %s234 = ssub.s32 1024, 1024
      %235 = vsyncadd [#allocation4], %s234
      %s236 = sshll.u32 [#allocation5], 4
      %s237 = int_to_ptr.vmem [resolvable:$true] %s236
      %242 = dma.vmem_to_hbm [thread:$0]  %s237, 1024, %s1, [#allocation4], 64, 64, 4
    $region13: #{tpu_custom_call.1} parent=1 // pred_fallthru
      _
    // Predicated region
    $region14: #{tpu_custom_call.1} parent=1 // pred_check
      _
    $region15: #{tpu_custom_call.1} parent=1 // pred_check_branch
      %244 = sbr.rel (0) target = $region17
    $region16: #{tpu_custom_call.1} parent=1 // pred_region
      %245 = dma.done [#allocation4], 1024
    $region17: #{tpu_custom_call.1} parent=1 // pred_fallthru
      _
    %246 = vsyncpa [#allocation3], 1
    %247 = vsyncpa [#allocation4], 1

</llo_original>
